<compile_context>
chip_gen: v5e
topology: v5e:2x2
jax: 0.10.0
libtpu: 0.0.40
codegen_flags: <defaults>
</compile_context>

<pallas_src>
import numpy as np
import jax
import jax.numpy as jnp
from jax.experimental import pallas as pl
from jax.experimental.pallas import tpu as pltpu


def pinn_kernel(x_ref, w0_ref, b0_ref, w1_ref, b1_ref, w2_ref, b2_ref, o_ref):
    # x_ref:  [D_in, TILE_N]   (batch on the lane axis)
    # wK_ref: [out, in]        (PyTorch layout, used directly as W @ x)
    # bK_ref: [out, 1]         (broadcast along lanes)
    x = x_ref[...]
    h = jnp.tanh(
        jnp.dot(w0_ref[...], x, preferred_element_type=jnp.float32) + b0_ref[...])
    h = jnp.tanh(
        jnp.dot(w1_ref[...], h, preferred_element_type=jnp.float32) + b1_ref[...])
    out = jnp.dot(w2_ref[...], h, preferred_element_type=jnp.float32) + b2_ref[...]
    o_ref[...] = out.astype(o_ref.dtype)


def pinn_2d_forward(x, x_mean, x_std, params, *, max_tile_n=1024):
    """Forward pass of PINN_2D.

    x:      [N, D_in] float32
    params: list of (W [out, in], b [out]) tuples (PyTorch layout).
    Returns [N, D_out] float32.
    """
    N, d_in = x.shape
    (w0, b0), (w1, b1), (w2, b2) = params
    d_out = w2.shape[0]

    # --- Fold input normalization into layer 0 (trace-time, exact math). ---
    inv_std = (1.0 / x_std).astype(jnp.float32)
    w0f = (w0 * inv_std[None, :]).astype(jnp.float32)          # [h0, d_in]
    b0f = (b0 - w0 @ (x_mean * inv_std)).astype(jnp.float32)   # [h0]

    # --- Lane-dense layout: batch on the last axis, padded to a multiple of
    #     128; tile size clamped to the padded batch (no wasted padding). ---
    n_128 = pl.cdiv(N, 128) * 128
    tile_n = min(max_tile_n, n_128)
    n_steps = pl.cdiv(N, tile_n)
    n_pad = n_steps * tile_n
    xT = jnp.pad(x.T.astype(jnp.float32), ((0, 0), (0, n_pad - N)))  # [d_in, n_pad]

    # Biases as [out, 1] columns so they broadcast over the lane (batch) axis.
    b0c = b0f.reshape(-1, 1)
    b1c = b1.reshape(-1, 1).astype(jnp.float32)
    b2c = b2.reshape(-1, 1).astype(jnp.float32)

    # Full-array resident operands (constant block index => no per-step DMA).
    full2 = lambda arr: pl.BlockSpec(arr.shape, lambda i: (0, 0))

    grid_spec = pltpu.PrefetchScalarGridSpec(
        num_scalar_prefetch=0,
        grid=(n_steps,),
        in_specs=[
            pl.BlockSpec((d_in, tile_n), lambda i: (0, i)),   # x tile (lane-dense)
            full2(w0f), full2(b0c),
            full2(w1), full2(b1c),
            full2(w2), full2(b2c),
        ],
        out_specs=pl.BlockSpec((d_out, tile_n), lambda i: (0, i)),
    )

    outT = pl.pallas_call(
        pinn_kernel,
        out_shape=jax.ShapeDtypeStruct((d_out, n_pad), jnp.float32),
        grid_spec=grid_spec,
        compiler_params=pltpu.CompilerParams(
            dimension_semantics=("parallel",)),
    )(xT, w0f, b0c, w1.astype(jnp.float32), b1c, w2.astype(jnp.float32), b2c)

    # Drop padding and return in the PyTorch-facing [N, D_out] layout.
    return outT[:, :N].T


def init_params(layer_mat, key):
    """Xavier-normal weights (zero biases), matching nn.init.xavier_normal_ /
    zeros_ in the PyTorch module.  Weights stored as [out, in] (PyTorch)."""
    params = []
    for i in range(len(layer_mat) - 1):
        fan_in, fan_out = layer_mat[i], layer_mat[i + 1]
        key, sub = jax.random.split(key)
        std = float(np.sqrt(2.0 / (fan_in + fan_out)))
        w = std * jax.random.normal(sub, (fan_out, fan_in), dtype=jnp.float32)
        b = jnp.zeros((fan_out,), dtype=jnp.float32)
        params.append((w, b))
    return params


def reference_forward(x, x_mean, x_std, params):
    h = (x - x_mean[None, :]) / x_std[None, :]
    for i, (w, b) in enumerate(params):
        h = h @ w.T + b[None, :]
        if i < len(params) - 1:
            h = jnp.tanh(h)
    return h


if __name__ == "__main__":
    # Typical 2D PINN: inputs (x, y), two hidden layers of 32, outputs (u, v, p).
    layer_mat = [2, 32, 32, 3]
    N = 1000          # ragged batch of collocation points (exercises padding)

    key = jax.random.PRNGKey(0)
    key, kx = jax.random.split(key)
    x = jax.random.normal(kx, (N, layer_mat[0]), dtype=jnp.float32)

    # Deterministic normalization stats (as if computed from data).
    x_mean = jnp.array([0.5, -0.25], dtype=jnp.float32)
    x_std = jnp.array([1.5, 0.75], dtype=jnp.float32)

    params = init_params(layer_mat, key)

    out = pinn_2d_forward(x, x_mean, x_std, params, max_tile_n=512)
    out = jax.block_until_ready(out)

    ref = reference_forward(x, x_mean, x_std, params)
    np.testing.assert_allclose(np.asarray(out), np.asarray(ref),
                               rtol=1e-5, atol=1e-5)
    print("KERNEL_OK")
</pallas_src>

<mosaic_0001>
module attributes {stable_mosaic.version = 11 : i64} {
  func.func @pinn_kernel(%arg0: i32, %arg1: memref<2x512xf32, #tpu.memory_space<vmem>>, %arg2: memref<32x2xf32, #tpu.memory_space<vmem>>, %arg3: memref<32x1xf32, #tpu.memory_space<vmem>>, %arg4: memref<32x32xf32, #tpu.memory_space<vmem>>, %arg5: memref<32x1xf32, #tpu.memory_space<vmem>>, %arg6: memref<3x32xf32, #tpu.memory_space<vmem>>, %arg7: memref<3x1xf32, #tpu.memory_space<vmem>>, %arg8: memref<3x512xf32, #tpu.memory_space<vmem>>) attributes {dimension_semantics = [#tpu.dimension_semantics<parallel>], iteration_bounds = array<i64: 2>, scalar_prefetch = 0 : i64, scratch_operands = 0 : i64, tpu.core_type = #tpu.core_type<tc>, window_params = [{transform_indices = @transform_0, window_bounds = array<i64: 2, 512>}, {pipeline_mode = #tpu.pipeline_mode<synchronous>, transform_indices = @transform_1, window_bounds = array<i64: 32, 2>}, {pipeline_mode = #tpu.pipeline_mode<synchronous>, transform_indices = @transform_2, window_bounds = array<i64: 32, 1>}, {pipeline_mode = #tpu.pipeline_mode<synchronous>, transform_indices = @transform_3, window_bounds = array<i64: 32, 32>}, {pipeline_mode = #tpu.pipeline_mode<synchronous>, transform_indices = @transform_4, window_bounds = array<i64: 32, 1>}, {pipeline_mode = #tpu.pipeline_mode<synchronous>, transform_indices = @transform_5, window_bounds = array<i64: 3, 32>}, {pipeline_mode = #tpu.pipeline_mode<synchronous>, transform_indices = @transform_6, window_bounds = array<i64: 3, 1>}, {transform_indices = @transform_7, window_bounds = array<i64: 3, 512>}]} {
    %c0 = arith.constant 0 : index
    %c0_0 = arith.constant 0 : index
    %0 = vector.load %arg1[%c0, %c0_0] : memref<2x512xf32, #tpu.memory_space<vmem>>, vector<2x512xf32>
    %c0_1 = arith.constant 0 : index
    %c0_2 = arith.constant 0 : index
    %1 = vector.load %arg2[%c0_1, %c0_2] : memref<32x2xf32, #tpu.memory_space<vmem>>, vector<32x2xf32>
    %cst = arith.constant dense<0.000000e+00> : vector<32x512xf32>
    %2 = tpu.matmul %1, %0, %cst {dimension_numbers = #tpu.dot_dimension_numbers<[1], [0], [0], [1], [0, 0, 1, 1], [], []>} : vector<32x2xf32>, vector<2x512xf32>, vector<32x512xf32> -> vector<32x512xf32>
    %c0_3 = arith.constant 0 : index
    %c0_4 = arith.constant 0 : index
    %3 = vector.load %arg3[%c0_3, %c0_4] : memref<32x1xf32, #tpu.memory_space<vmem>>, vector<32x1xf32>
    %4 = vector.broadcast %3 : vector<32x1xf32> to vector<32x512xf32>
    %5 = arith.addf %2, %4 : vector<32x512xf32>
    %6 = math.tanh %5 : vector<32x512xf32>
    %c0_5 = arith.constant 0 : index
    %c0_6 = arith.constant 0 : index
    %7 = vector.load %arg4[%c0_5, %c0_6] : memref<32x32xf32, #tpu.memory_space<vmem>>, vector<32x32xf32>
    %cst_7 = arith.constant dense<0.000000e+00> : vector<32x512xf32>
    %8 = tpu.matmul %7, %6, %cst_7 {dimension_numbers = #tpu.dot_dimension_numbers<[1], [0], [0], [1], [0, 0, 1, 1], [], []>} : vector<32x32xf32>, vector<32x512xf32>, vector<32x512xf32> -> vector<32x512xf32>
    %c0_8 = arith.constant 0 : index
    %c0_9 = arith.constant 0 : index
    %9 = vector.load %arg5[%c0_8, %c0_9] : memref<32x1xf32, #tpu.memory_space<vmem>>, vector<32x1xf32>
    %10 = vector.broadcast %9 : vector<32x1xf32> to vector<32x512xf32>
    %11 = arith.addf %8, %10 : vector<32x512xf32>
    %12 = math.tanh %11 : vector<32x512xf32>
    %c0_10 = arith.constant 0 : index
    %c0_11 = arith.constant 0 : index
    %13 = vector.load %arg6[%c0_10, %c0_11] : memref<3x32xf32, #tpu.memory_space<vmem>>, vector<3x32xf32>
    %cst_12 = arith.constant dense<0.000000e+00> : vector<3x512xf32>
    %14 = tpu.matmul %13, %12, %cst_12 {dimension_numbers = #tpu.dot_dimension_numbers<[1], [0], [0], [1], [0, 0, 1, 1], [], []>} : vector<3x32xf32>, vector<32x512xf32>, vector<3x512xf32> -> vector<3x512xf32>
    %c0_13 = arith.constant 0 : index
    %c0_14 = arith.constant 0 : index
    %15 = vector.load %arg7[%c0_13, %c0_14] : memref<3x1xf32, #tpu.memory_space<vmem>>, vector<3x1xf32>
    %16 = vector.broadcast %15 : vector<3x1xf32> to vector<3x512xf32>
    %17 = arith.addf %14, %16 : vector<3x512xf32>
    %c0_15 = arith.constant 0 : index
    %c0_16 = arith.constant 0 : index
    %18 = vector.load %arg8[%c0_15, %c0_16] : memref<3x512xf32, #tpu.memory_space<vmem>>, vector<3x512xf32>
    tpu.vector_store %arg8[%c0_15, %c0_16], %17 {strides = array<i32>} : memref<3x512xf32, #tpu.memory_space<vmem>>, vector<3x512xf32>,
    return
  }
  func.func @transform_0(%arg0: i32) -> (i32, i32) {
    %c0_i32 = arith.constant 0 : i32
    %c0_i32_0 = arith.constant 0 : i32
    return %c0_i32, %arg0 : i32, i32
  }
  func.func @transform_1(%arg0: i32) -> (i32, i32) {
    %c0_i32 = arith.constant 0 : i32
    %c0_i32_0 = arith.constant 0 : i32
    %c0_i32_1 = arith.constant 0 : i32
    return %c0_i32, %c0_i32_0 : i32, i32
  }
  func.func @transform_2(%arg0: i32) -> (i32, i32) {
    %c0_i32 = arith.constant 0 : i32
    %c0_i32_0 = arith.constant 0 : i32
    %c0_i32_1 = arith.constant 0 : i32
    return %c0_i32, %c0_i32_0 : i32, i32
  }
  func.func @transform_3(%arg0: i32) -> (i32, i32) {
    %c0_i32 = arith.constant 0 : i32
    %c0_i32_0 = arith.constant 0 : i32
    %c0_i32_1 = arith.constant 0 : i32
    return %c0_i32, %c0_i32_0 : i32, i32
  }
  func.func @transform_4(%arg0: i32) -> (i32, i32) {
    %c0_i32 = arith.constant 0 : i32
    %c0_i32_0 = arith.constant 0 : i32
    %c0_i32_1 = arith.constant 0 : i32
    return %c0_i32, %c0_i32_0 : i32, i32
  }
  func.func @transform_5(%arg0: i32) -> (i32, i32) {
    %c0_i32 = arith.constant 0 : i32
    %c0_i32_0 = arith.constant 0 : i32
    %c0_i32_1 = arith.constant 0 : i32
    return %c0_i32, %c0_i32_0 : i32, i32
  }
  func.func @transform_6(%arg0: i32) -> (i32, i32) {
    %c0_i32 = arith.constant 0 : i32
    %c0_i32_0 = arith.constant 0 : i32
    %c0_i32_1 = arith.constant 0 : i32
    return %c0_i32, %c0_i32_0 : i32, i32
  }
  func.func @transform_7(%arg0: i32) -> (i32, i32) {
    %c0_i32 = arith.constant 0 : i32
    %c0_i32_0 = arith.constant 0 : i32
    return %c0_i32, %arg0 : i32, i32
  }
}

</mosaic_0001>

<llo_original>
// kernel: tpu_custom_call.1
$region0: #{tpu_custom_call.1}
  #allocation0 [shape = 'u32[]', space=smem, size = 0x4, offset = 0x4, fixed_abs, tag = 'smem constant byte address 0x4 - core index']
  #allocation1 [shape = 'u32[72,128]{1,0:T(1,128)}', space=vmem, size = 0x9000, scoped, tag = 'internal scratch']
  %s0 = inlined_call_operand.vmem [shape: f32[2,1024], index: 0, kind: input, shape index: {}]
  %s1 = inlined_call_operand.vmem [shape: f32[32,2], index: 1, kind: input, shape index: {}]
  %s2 = inlined_call_operand.vmem [shape: f32[32,1], index: 2, kind: input, shape index: {}]
  %s3 = inlined_call_operand.vmem [shape: f32[32,32], index: 3, kind: input, shape index: {}]
  %s4 = inlined_call_operand.vmem [shape: f32[32,1], index: 4, kind: input, shape index: {}]
  %s5 = inlined_call_operand.vmem [shape: f32[3,32], index: 5, kind: input, shape index: {}]
  %s6 = inlined_call_operand.vmem [shape: f32[3,1], index: 6, kind: input, shape index: {}]
  %s7 = inlined_call_operand.hbm [shape: f32[3,1024], index: 7, kind: output, shape index: {}]
  %s8 = sld [smem:[#allocation0]]
  $region61: #{tpu_custom_call.1} parent=0
    _
  %s10 = ssub.s32 1, %s8
  %s11 = scalar_select 0, %s10, %s8
  $region1: #{tpu_custom_call.1} parent=0
    #allocation2 [shape = 'u8[16384]{0}', space=vmem, size = 0x4000, scoped, tag = 'output window, operand 0']
    #allocation3 [shape = 's32[2]{0}', space=sflag, size = 0x8, scoped, tag = 'scoped memory for tpu_custom_call.1']
    %12 = vsyncpa [#allocation3], 0
    %s13 = scalar_lea.sflag [#allocation3], 1
    %14 = vsyncpa %s13, 0
    loop: start=0, step=1, limit=4
    $region2: #{tpu_custom_call.1} parent=1 // loop_pre_header
      _
    $region3: #{tpu_custom_call.1} parent=1 // loop_header
      %s16 = sphi 0, %s20
      %p17 = scmp.ge.s32.totalorder %s16, 4
      %s26 = sphi 0, %s28
      %s29 = sphi 0, %s26
      %s30 = sphi 0, %s29
      %s46 = sphi 0, %s30
      %s50 = sphi 0, %s50
      %s52 = sphi 0, %s50
      %s53 = sphi 0, %s52
      %s67 = sphi 0, %s53
      %s71 = sphi 0, %s71
      %s73 = sphi 0, %s71
      %s74 = sphi 0, %s73
      %s88 = sphi 0, %s74
      %s92 = sphi 0, %s92
      %s94 = sphi 0, %s92
      %s95 = sphi 0, %s94
      %s109 = sphi 0, %s95
      %s113 = sphi 0, %s113
      %s115 = sphi 0, %s113
      %s116 = sphi 0, %s115
      %s130 = sphi 0, %s116
      %s134 = sphi 0, %s134
      %s136 = sphi 0, %s134
      %s137 = sphi 0, %s136
      %s151 = sphi 0, %s137
      %s155 = sphi 0, %s155
      %s157 = sphi 0, %s155
      %s158 = sphi 0, %s157
      %s172 = sphi 0, %s158
      %s178 = sphi 0, %s180
      %s181 = sphi 0, %s178
      %s182 = sphi 0, %s181
      %s198 = sphi 0, %s182
    $region4: #{tpu_custom_call.1} parent=1 // loop_header_branch
      %19 = sbr.rel (%p17) target = $region8
    $region5: #{tpu_custom_call.1} parent=1 // loop_body
      %s21 = ssub.s32 %s16, 1
      %s22 = ssub.s32 %s16, 2
      %s23 = sadd.s32 %s16, 1
      %s24 = ssub.s32 %s16, %s23
      %p25 = scmp.eq.s32.totalorder %s24, 0
      %s27 = sadd.s32 %s26, 1
      %s28 = scalar_select %p25, %s26, %s27
      %p31 = pneg %p25
      %p32 = scmp.eq.s32.totalorder %s16, 1
      %p33 = por %p31, %p32
      %p34 = scmp.ne.s32.totalorder %s26, %s29
      %p35 = scmp.eq.s32.totalorder %s16, 0
      %p36 = por %p34, %p35
      %p37 = scmp.ne.s32.totalorder %s26, %s29
      %p38 = scmp.eq.s32.totalorder %s21, 1
      %p39 = por %p37, %p38
      %p40 = scmp.ne.s32.totalorder %s29, %s30
      %p41 = scmp.eq.s32.totalorder %s21, 0
      %p42 = por %p40, %p41
      %p43 = scmp.ne.s32.totalorder %s29, %s30
      %p44 = scmp.eq.s32.totalorder %s22, 1
      %p45 = por %p43, %p44
      %p47 = scmp.ne.s32.totalorder %s30, %s46
      %p48 = scmp.eq.s32.totalorder %s22, 0
      %p49 = por %p47, %p48
      %s51 = sadd.s32 %s50, 1
      %p54 = scmp.eq.s32.totalorder %s16, 1
      %p55 = scmp.ne.s32.totalorder %s50, %s52
      %p56 = scmp.eq.s32.totalorder %s16, 0
      %p57 = por %p55, %p56
      %p58 = scmp.ne.s32.totalorder %s50, %s52
      %p59 = scmp.eq.s32.totalorder %s21, 1
      %p60 = por %p58, %p59
      %p61 = scmp.ne.s32.totalorder %s52, %s53
      %p62 = scmp.eq.s32.totalorder %s21, 0
      %p63 = por %p61, %p62
      %p64 = scmp.ne.s32.totalorder %s52, %s53
      %p65 = scmp.eq.s32.totalorder %s22, 1
      %p66 = por %p64, %p65
      %p68 = scmp.ne.s32.totalorder %s53, %s67
      %p69 = scmp.eq.s32.totalorder %s22, 0
      %p70 = por %p68, %p69
      %s72 = sadd.s32 %s71, 1
      %p75 = scmp.eq.s32.totalorder %s16, 1
      %p76 = scmp.ne.s32.totalorder %s71, %s73
      %p77 = scmp.eq.s32.totalorder %s16, 0
      %p78 = por %p76, %p77
      %p79 = scmp.ne.s32.totalorder %s71, %s73
      %p80 = scmp.eq.s32.totalorder %s21, 1
      %p81 = por %p79, %p80
      %p82 = scmp.ne.s32.totalorder %s73, %s74
      %p83 = scmp.eq.s32.totalorder %s21, 0
      %p84 = por %p82, %p83
      %p85 = scmp.ne.s32.totalorder %s73, %s74
      %p86 = scmp.eq.s32.totalorder %s22, 1
      %p87 = por %p85, %p86
      %p89 = scmp.ne.s32.totalorder %s74, %s88
      %p90 = scmp.eq.s32.totalorder %s22, 0
      %p91 = por %p89, %p90
      %s93 = sadd.s32 %s92, 1
      %p96 = scmp.eq.s32.totalorder %s16, 1
      %p97 = scmp.ne.s32.totalorder %s92, %s94
      %p98 = scmp.eq.s32.totalorder %s16, 0
      %p99 = por %p97, %p98
      %p100 = scmp.ne.s32.totalorder %s92, %s94
      %p101 = scmp.eq.s32.totalorder %s21, 1
      %p102 = por %p100, %p101
      %p103 = scmp.ne.s32.totalorder %s94, %s95
      %p104 = scmp.eq.s32.totalorder %s21, 0
      %p105 = por %p103, %p104
      %p106 = scmp.ne.s32.totalorder %s94, %s95
      %p107 = scmp.eq.s32.totalorder %s22, 1
      %p108 = por %p106, %p107
      %p110 = scmp.ne.s32.totalorder %s95, %s109
      %p111 = scmp.eq.s32.totalorder %s22, 0
      %p112 = por %p110, %p111
      %s114 = sadd.s32 %s113, 1
      %p117 = scmp.eq.s32.totalorder %s16, 1
      %p118 = scmp.ne.s32.totalorder %s113, %s115
      %p119 = scmp.eq.s32.totalorder %s16, 0
      %p120 = por %p118, %p119
      %p121 = scmp.ne.s32.totalorder %s113, %s115
      %p122 = scmp.eq.s32.totalorder %s21, 1
      %p123 = por %p121, %p122
      %p124 = scmp.ne.s32.totalorder %s115, %s116
      %p125 = scmp.eq.s32.totalorder %s21, 0
      %p126 = por %p124, %p125
      %p127 = scmp.ne.s32.totalorder %s115, %s116
      %p128 = scmp.eq.s32.totalorder %s22, 1
      %p129 = por %p127, %p128
      %p131 = scmp.ne.s32.totalorder %s116, %s130
      %p132 = scmp.eq.s32.totalorder %s22, 0
      %p133 = por %p131, %p132
      %s135 = sadd.s32 %s134, 1
      %p138 = scmp.eq.s32.totalorder %s16, 1
      %p139 = scmp.ne.s32.totalorder %s134, %s136
      %p140 = scmp.eq.s32.totalorder %s16, 0
      %p141 = por %p139, %p140
      %p142 = scmp.ne.s32.totalorder %s134, %s136
      %p143 = scmp.eq.s32.totalorder %s21, 1
      %p144 = por %p142, %p143
      %p145 = scmp.ne.s32.totalorder %s136, %s137
      %p146 = scmp.eq.s32.totalorder %s21, 0
      %p147 = por %p145, %p146
      %p148 = scmp.ne.s32.totalorder %s136, %s137
      %p149 = scmp.eq.s32.totalorder %s22, 1
      %p150 = por %p148, %p149
      %p152 = scmp.ne.s32.totalorder %s137, %s151
      %p153 = scmp.eq.s32.totalorder %s22, 0
      %p154 = por %p152, %p153
      %s156 = sadd.s32 %s155, 1
      %p159 = scmp.eq.s32.totalorder %s16, 1
      %p160 = scmp.ne.s32.totalorder %s155, %s157
      %p161 = scmp.eq.s32.totalorder %s16, 0
      %p162 = por %p160, %p161
      %p163 = scmp.ne.s32.totalorder %s155, %s157
      %p164 = scmp.eq.s32.totalorder %s21, 1
      %p165 = por %p163, %p164
      %p166 = scmp.ne.s32.totalorder %s157, %s158
      %p167 = scmp.eq.s32.totalorder %s21, 0
      %p168 = por %p166, %p167
      %p169 = scmp.ne.s32.totalorder %s157, %s158
      %p170 = scmp.eq.s32.totalorder %s22, 1
      %p171 = por %p169, %p170
      %p173 = scmp.ne.s32.totalorder %s158, %s172
      %p174 = scmp.eq.s32.totalorder %s22, 0
      %p175 = por %p173, %p174
      %s176 = ssub.s32 %s16, %s23
      %p177 = scmp.eq.s32.totalorder %s176, 0
      %s179 = sadd.s32 %s178, 1
      %s180 = scalar_select %p177, %s178, %s179
      %p183 = pneg %p177
      %p184 = scmp.eq.s32.totalorder %s16, 1
      %p185 = por %p183, %p184
      %p186 = scmp.ne.s32.totalorder %s178, %s181
      %p187 = scmp.eq.s32.totalorder %s16, 0
      %p188 = por %p186, %p187
      %p189 = scmp.ne.s32.totalorder %s178, %s181
      %p190 = scmp.eq.s32.totalorder %s21, 1
      %p191 = por %p189, %p190
      %p192 = scmp.ne.s32.totalorder %s181, %s182
      %p193 = scmp.eq.s32.totalorder %s21, 0
      %p194 = por %p192, %p193
      %p195 = scmp.ne.s32.totalorder %s181, %s182
      %p196 = scmp.eq.s32.totalorder %s22, 1
      %p197 = por %p195, %p196
      %p199 = scmp.ne.s32.totalorder %s182, %s198
      %p200 = scmp.eq.s32.totalorder %s22, 0
      %p201 = por %p199, %p200
      %p202 = scmp.le.s32.totalorder 1, %s16
      %p203 = scmp.lt.s32.totalorder %s16, 3
      %p204 = pnand %p202, %p203
      %p205 = pneg %p204
      // Predicated region
      $region9: #{tpu_custom_call.1} parent=5 // pred_check
        _
      $region10: #{tpu_custom_call.1} parent=5 // pred_check_branch
        %207 = sbr.rel (%p204) target = $region12
      $region11: #{tpu_custom_call.1} parent=5 // pred_region
        %s208 = ssub.s32 %s16, 1
        // Predicated region
        $region13: #{tpu_custom_call.1} parent=11 // pred_check
          %p209 = pneg %p63
        $region14: #{tpu_custom_call.1} parent=11 // pred_check_branch
          %211 = sbr.rel (%p209) target = $region16
        $region15: #{tpu_custom_call.1} parent=11 // pred_region
          _
        $region16: #{tpu_custom_call.1} parent=11 // pred_fallthru
          _
        // Predicated region
        $region17: #{tpu_custom_call.1} parent=11 // pred_check
          %p212 = pneg %p84
        $region18: #{tpu_custom_call.1} parent=11 // pred_check_branch
          %214 = sbr.rel (%p212) target = $region20
        $region19: #{tpu_custom_call.1} parent=11 // pred_region
          _
        $region20: #{tpu_custom_call.1} parent=11 // pred_fallthru
          _
        // Predicated region
        $region21: #{tpu_custom_call.1} parent=11 // pred_check
          %p215 = pneg %p105
        $region22: #{tpu_custom_call.1} parent=11 // pred_check_branch
          %217 = sbr.rel (%p215) target = $region24
        $region23: #{tpu_custom_call.1} parent=11 // pred_region
          _
        $region24: #{tpu_custom_call.1} parent=11 // pred_fallthru
          _
        // Predicated region
        $region25: #{tpu_custom_call.1} parent=11 // pred_check
          %p218 = pneg %p126
        $region26: #{tpu_custom_call.1} parent=11 // pred_check_branch
          %220 = sbr.rel (%p218) target = $region28
        $region27: #{tpu_custom_call.1} parent=11 // pred_region
          _
        $region28: #{tpu_custom_call.1} parent=11 // pred_fallthru
          _
        // Predicated region
        $region29: #{tpu_custom_call.1} parent=11 // pred_check
          %p221 = pneg %p147
        $region30: #{tpu_custom_call.1} parent=11 // pred_check_branch
          %223 = sbr.rel (%p221) target = $region32
        $region31: #{tpu_custom_call.1} parent=11 // pred_region
          _
        $region32: #{tpu_custom_call.1} parent=11 // pred_fallthru
          _
        // Predicated region
        $region33: #{tpu_custom_call.1} parent=11 // pred_check
          %p224 = pneg %p168
        $region34: #{tpu_custom_call.1} parent=11 // pred_check_branch
          %226 = sbr.rel (%p224) target = $region36
        $region35: #{tpu_custom_call.1} parent=11 // pred_region
          _
        $region36: #{tpu_custom_call.1} parent=11 // pred_fallthru
          _
      $region12: #{tpu_custom_call.1} parent=5 // pred_fallthru
        _
      %p227 = scmp.lt.s32.totalorder %s16, 2
      // Predicated region
      $region37: #{tpu_custom_call.1} parent=5 // pred_check
        %p228 = pneg %p227
      $region38: #{tpu_custom_call.1} parent=5 // pred_check_branch
        %230 = sbr.rel (%p228) target = $region40
      $region39: #{tpu_custom_call.1} parent=5 // pred_region
        // Predicated region
        $region41: #{tpu_custom_call.1} parent=39 // pred_check
          %p231 = pneg %p36
        $region42: #{tpu_custom_call.1} parent=39 // pred_check_branch
          %233 = sbr.rel (%p231) target = $region44
        $region43: #{tpu_custom_call.1} parent=39 // pred_region
          %s234 = smul.u32 4, %s16
          %p235 = scmp.lt.s32.totalorder %s234, 7
          %s236 = scalar_select %p235, %s234, 7
          %s237 = smul.addr %s236, 2
          %s238 = scalar_lea.vmem %s0, %s237
          %s239 = smul.u32 4, %s16
        $region44: #{tpu_custom_call.1} parent=39 // pred_fallthru
          _
      $region40: #{tpu_custom_call.1} parent=5 // pred_fallthru
        _
      %p240 = scmp.le.s32.totalorder 1, %s16
      %p241 = scmp.lt.s32.totalorder %s16, 3
      %p242 = pnand %p240, %p241
      %p243 = pneg %p242
      // Predicated region
      $region45: #{tpu_custom_call.1} parent=5 // pred_check
        _
      $region46: #{tpu_custom_call.1} parent=5 // pred_check_branch
        %245 = sbr.rel (%p242) target = $region48
      $region47: #{tpu_custom_call.1} parent=5 // pred_region
        %s246 = ssub.s32 %s16, 1
        %s247 = smul.u32 4, %s21
        %p248 = scmp.lt.s32.totalorder %s247, 7
        %s249 = scalar_select %p248, %s247, 7
        %s250 = smul.addr %s249, 2
        %s251 = scalar_lea.vmem %s0, %s250
        %p252 = pneg %p42
        %p253 = pneg %p39
        %p254 = pneg %p63
        %p255 = pneg %p60
        %p256 = pneg %p84
        %p257 = pneg %p81
        %p258 = pneg %p105
        %p259 = pneg %p102
        %p260 = pneg %p126
        %p261 = pneg %p123
        %p262 = pneg %p147
        %p263 = pneg %p144
        %p264 = pneg %p168
        %p265 = pneg %p165
        %p266 = pneg %p194
        %p267 = pneg %p191
        %s268 = sand.u32 %s181, 1
        %s269 = scalar_lea.sflag [#allocation3], %s268
        %s270 = sand.u32 %s181, 1
        %s271 = smul.addr %s270, 16
        %s272 = scalar_lea.vmem [#allocation2], %s271
        %s273 = smul.u32 4, %s21
        %p274 = scmp.lt.s32.totalorder %s273, 7
        %s275 = scalar_select %p274, %s273, 7
        %s276 = smul.addr %s275, 2
        %s277 = scalar_lea.vmem %s0, %s276
        %s278 = smul.u32 4, %s21
        %s279 = smul.u32 4, %s21
        %v280 = vld [vmem:[%s277] sm:$0xff]
        %v281 = vld [vmem:[%s1] sm:$0xff]
        %v282 = vld [vmem:[%s1 + $0x8] sm:$0xff]
        %v283 = vld [vmem:[%s1 + $0x10] sm:$0xff]
        %v284 = vld [vmem:[%s1 + $0x18] sm:$0xff]
        %v285 = vld [vmem:[%s2] sm:$0xff]
        %v286 = vld [vmem:[%s2 + $0x8] sm:$0xff]
        %v287 = vld [vmem:[%s2 + $0x10] sm:$0xff]
        %v288 = vld [vmem:[%s2 + $0x18] sm:$0xff]
        %290 = vset.pattern.permute.xlu0 0
        %291 = vperm.xlu0 %290, %v285
        %v292 = vpop.permute.xlu0 %291
        %295 = vset.pattern.permute.xlu0 0
        %296 = vperm.xlu0 %295, %v286
        %v297 = vpop.permute.xlu0 %296
        %300 = vset.pattern.permute.xlu0 0
        %301 = vperm.xlu0 %300, %v287
        %v302 = vpop.permute.xlu0 %301
        %305 = vset.pattern.permute.xlu0 0
        %306 = vperm.xlu0 %305, %v288
        %v307 = vpop.permute.xlu0 %306
        %310 = vst [vmem:[#allocation1] ss:$4 sm:$0xff] %v280
        %v311 = vld.sshfl [vmem:[#allocation1] sm:$0xff pattern:$0x73625140]
        %v312 = vld.sshfl [vmem:[#allocation1 + $0x8] sm:$0xff pattern:$0x73625140]
        %v313 = vld.sshfl [vmem:[#allocation1 + $0x10] sm:$0xff pattern:$0x73625140]
        %v314 = vld.sshfl [vmem:[#allocation1 + $0x18] sm:$0xff pattern:$0x73625140]
        %vm315 = vcmask 15360
        %v317 = vsel %vm315, %v281, 0
        %v320 = vsel %vm315, %v282, 0
        %v323 = vsel %vm315, %v283, 0
        %v326 = vsel %vm315, %v284, 0
        %vm328 = vcmask 1041408
        %v329 = vsel %vm328, %v311, 0
        %v331 = vsel %vm328, %v312, 0
        %v333 = vsel %vm328, %v313, 0
        %v335 = vsel %vm328, %v314, 0
        %337 = vmatpush.msra.mxu0 0.0
        %338 = vmatpush.msra.mxu0 0.0
        %339 = vmatpush.msra.mxu0 0.0
        %340 = vmatpush.msra.mxu0 0.0
        %341 = vmatpush.msra.mxu0 0.0
        %342 = vmatpush.msra.mxu0 0.0
        %343 = vmatpush.msra.mxu0 0.0
        %344 = vmatpush.msra.mxu0 0.0
        %345 = vmatpush.msra.mxu0 0.0
        %346 = vmatpush.msra.mxu0 0.0
        %347 = vmatpush.msra.mxu0 0.0
        %348 = vmatpush.msra.mxu0 0.0
        %349 = vmatpush.msra.mxu0 0.0
        %350 = vmatpush.msra.mxu0 0.0
        %351 = vmatpush.msra.mxu0 0.0
        %352 = vmatpush.msra.mxu0 %v329
        %353 = vmatmul.f32.gmra.mxu0 %v317
        %v354 = vpop.f32.mrf.mxu0
        %v355 = vadd.f32 %v292, %v354
        %356 = vmatmul.f32.gmra.mxu0 %v320
        %v357 = vpop.f32.mrf.mxu0
        %v358 = vadd.f32 %v297, %v357
        %359 = vmatmul.f32.gmra.mxu0 %v323
        %v360 = vpop.f32.mrf.mxu0
        %v361 = vadd.f32 %v302, %v360
        %362 = vmatmul.f32.gmra.mxu0 %v326
        %v363 = vpop.f32.mrf.mxu0
        %v364 = vadd.f32 %v307, %v363
        %365 = vdwg.mxu0
        %366 = vmatpush.msra.mxu0 0.0
        %367 = vmatpush.msra.mxu0 0.0
        %368 = vmatpush.msra.mxu0 0.0
        %369 = vmatpush.msra.mxu0 0.0
        %370 = vmatpush.msra.mxu0 0.0
        %371 = vmatpush.msra.mxu0 0.0
        %372 = vmatpush.msra.mxu0 0.0
        %373 = vmatpush.msra.mxu0 0.0
        %374 = vmatpush.msra.mxu0 0.0
        %375 = vmatpush.msra.mxu0 0.0
        %376 = vmatpush.msra.mxu0 0.0
        %377 = vmatpush.msra.mxu0 0.0
        %378 = vmatpush.msra.mxu0 0.0
        %379 = vmatpush.msra.mxu0 0.0
        %380 = vmatpush.msra.mxu0 0.0
        %381 = vmatpush.msra.mxu0 %v331
        %382 = vmatmul.f32.gmra.mxu0 %v317
        %v383 = vpop.f32.mrf.mxu0
        %v384 = vadd.f32 %v292, %v383
        %385 = vmatmul.f32.gmra.mxu0 %v320
        %v386 = vpop.f32.mrf.mxu0
        %v387 = vadd.f32 %v297, %v386
        %388 = vmatmul.f32.gmra.mxu0 %v323
        %v389 = vpop.f32.mrf.mxu0
        %v390 = vadd.f32 %v302, %v389
        %391 = vmatmul.f32.gmra.mxu0 %v326
        %v392 = vpop.f32.mrf.mxu0
        %v393 = vadd.f32 %v307, %v392
        %394 = vdwg.mxu0
        %395 = vmatpush.msra.mxu0 0.0
        %396 = vmatpush.msra.mxu0 0.0
        %397 = vmatpush.msra.mxu0 0.0
        %398 = vmatpush.msra.mxu0 0.0
        %399 = vmatpush.msra.mxu0 0.0
        %400 = vmatpush.msra.mxu0 0.0
        %401 = vmatpush.msra.mxu0 0.0
        %402 = vmatpush.msra.mxu0 0.0
        %403 = vmatpush.msra.mxu0 0.0
        %404 = vmatpush.msra.mxu0 0.0
        %405 = vmatpush.msra.mxu0 0.0
        %406 = vmatpush.msra.mxu0 0.0
        %407 = vmatpush.msra.mxu0 0.0
        %408 = vmatpush.msra.mxu0 0.0
        %409 = vmatpush.msra.mxu0 0.0
        %410 = vmatpush.msra.mxu0 %v333
        %411 = vmatmul.f32.gmra.mxu0 %v317
        %v412 = vpop.f32.mrf.mxu0
        %v413 = vadd.f32 %v292, %v412
        %414 = vmatmul.f32.gmra.mxu0 %v320
        %v415 = vpop.f32.mrf.mxu0
        %v416 = vadd.f32 %v297, %v415
        %417 = vmatmul.f32.gmra.mxu0 %v323
        %v418 = vpop.f32.mrf.mxu0
        %v419 = vadd.f32 %v302, %v418
        %420 = vmatmul.f32.gmra.mxu0 %v326
        %v421 = vpop.f32.mrf.mxu0
        %v422 = vadd.f32 %v307, %v421
        %423 = vdwg.mxu0
        %424 = vmatpush.msra.mxu0 0.0
        %425 = vmatpush.msra.mxu0 0.0
        %426 = vmatpush.msra.mxu0 0.0
        %427 = vmatpush.msra.mxu0 0.0
        %428 = vmatpush.msra.mxu0 0.0
        %429 = vmatpush.msra.mxu0 0.0
        %430 = vmatpush.msra.mxu0 0.0
        %431 = vmatpush.msra.mxu0 0.0
        %432 = vmatpush.msra.mxu0 0.0
        %433 = vmatpush.msra.mxu0 0.0
        %434 = vmatpush.msra.mxu0 0.0
        %435 = vmatpush.msra.mxu0 0.0
        %436 = vmatpush.msra.mxu0 0.0
        %437 = vmatpush.msra.mxu0 0.0
        %438 = vmatpush.msra.mxu0 0.0
        %439 = vmatpush.msra.mxu0 %v335
        %440 = vmatmul.f32.gmra.mxu0 %v317
        %v441 = vpop.f32.mrf.mxu0
        %v442 = vadd.f32 %v292, %v441
        %443 = vmatmul.f32.gmra.mxu0 %v320
        %v444 = vpop.f32.mrf.mxu0
        %v445 = vadd.f32 %v297, %v444
        %446 = vmatmul.f32.gmra.mxu0 %v323
        %v447 = vpop.f32.mrf.mxu0
        %v448 = vadd.f32 %v302, %v447
        %449 = vmatmul.f32.gmra.mxu0 %v326
        %v450 = vpop.f32.mrf.mxu0
        %v451 = vadd.f32 %v307, %v450
        %452 = vdwg.mxu0
        %v453 = vtanh.pop %v355
        %v454 = vtanh.pop %v384
        %v455 = vtanh.pop %v413
        %v456 = vtanh.pop %v442
        %v457 = vtanh.pop %v358
        %v458 = vtanh.pop %v387
        %v459 = vtanh.pop %v416
        %v460 = vtanh.pop %v445
        %v461 = vtanh.pop %v361
        %v462 = vtanh.pop %v390
        %v463 = vtanh.pop %v419
        %v464 = vtanh.pop %v448
        %v465 = vtanh.pop %v364
        %v466 = vtanh.pop %v393
        %v467 = vtanh.pop %v422
        %v468 = vtanh.pop %v451
        %v469 = vld [vmem:[%s3] sm:$0xff]
        %v470 = vld [vmem:[%s3 + $0x8] sm:$0xff]
        %v471 = vld [vmem:[%s3 + $0x10] sm:$0xff]
        %v472 = vld [vmem:[%s3 + $0x18] sm:$0xff]
        %v473 = vld [vmem:[%s4] sm:$0xff]
        %v474 = vld [vmem:[%s4 + $0x8] sm:$0xff]
        %v475 = vld [vmem:[%s4 + $0x10] sm:$0xff]
        %v476 = vld [vmem:[%s4 + $0x18] sm:$0xff]
        %478 = vset.pattern.permute.xlu0 0
        %479 = vperm.xlu0 %478, %v473
        %v480 = vpop.permute.xlu0 %479
        %483 = vset.pattern.permute.xlu0 0
        %484 = vperm.xlu0 %483, %v474
        %v485 = vpop.permute.xlu0 %484
        %488 = vset.pattern.permute.xlu0 0
        %489 = vperm.xlu0 %488, %v475
        %v490 = vpop.permute.xlu0 %489
        %493 = vset.pattern.permute.xlu0 0
        %494 = vperm.xlu0 %493, %v476
        %v495 = vpop.permute.xlu0 %494
        %vm497 = vcmask 261120
        %v499 = vsel %vm497, %v469, 0
        %v502 = vsel %vm497, %v470, 0
        %v505 = vsel %vm497, %v471, 0
        %v508 = vsel %vm497, %v472, 0
        %510 = vmatpush.msra.mxu0 0.0
        %511 = vmatpush.msra.mxu0 0.0
        %512 = vmatpush.msra.mxu0 0.0
        %513 = vmatpush.msra.mxu0 0.0
        %514 = vmatpush.msra.mxu0 0.0
        %515 = vmatpush.msra.mxu0 0.0
        %516 = vmatpush.msra.mxu0 0.0
        %517 = vmatpush.msra.mxu0 0.0
        %518 = vmatpush.msra.mxu0 0.0
        %519 = vmatpush.msra.mxu0 0.0
        %520 = vmatpush.msra.mxu0 0.0
        %521 = vmatpush.msra.mxu0 0.0
        %522 = vmatpush.msra.mxu0 %v465
        %523 = vmatpush.msra.mxu0 %v461
        %524 = vmatpush.msra.mxu0 %v457
        %525 = vmatpush.msra.mxu0 %v453
        %526 = vmatmul.f32.gmra.mxu0 %v499
        %v527 = vpop.f32.mrf.mxu0
        %v528 = vadd.f32 %v480, %v527
        %529 = vmatmul.f32.gmra.mxu0 %v502
        %v530 = vpop.f32.mrf.mxu0
        %v531 = vadd.f32 %v485, %v530
        %532 = vmatmul.f32.gmra.mxu0 %v505
        %v533 = vpop.f32.mrf.mxu0
        %v534 = vadd.f32 %v490, %v533
        %535 = vmatmul.f32.gmra.mxu0 %v508
        %v536 = vpop.f32.mrf.mxu0
        %v537 = vadd.f32 %v495, %v536
        %538 = vdwg.mxu0
        %539 = vmatpush.msra.mxu0 0.0
        %540 = vmatpush.msra.mxu0 0.0
        %541 = vmatpush.msra.mxu0 0.0
        %542 = vmatpush.msra.mxu0 0.0
        %543 = vmatpush.msra.mxu0 0.0
        %544 = vmatpush.msra.mxu0 0.0
        %545 = vmatpush.msra.mxu0 0.0
        %546 = vmatpush.msra.mxu0 0.0
        %547 = vmatpush.msra.mxu0 0.0
        %548 = vmatpush.msra.mxu0 0.0
        %549 = vmatpush.msra.mxu0 0.0
        %550 = vmatpush.msra.mxu0 0.0
        %551 = vmatpush.msra.mxu0 %v466
        %552 = vmatpush.msra.mxu0 %v462
        %553 = vmatpush.msra.mxu0 %v458
        %554 = vmatpush.msra.mxu0 %v454
        %555 = vmatmul.f32.gmra.mxu0 %v499
        %v556 = vpop.f32.mrf.mxu0
        %v557 = vadd.f32 %v480, %v556
        %558 = vmatmul.f32.gmra.mxu0 %v502
        %v559 = vpop.f32.mrf.mxu0
        %v560 = vadd.f32 %v485, %v559
        %561 = vmatmul.f32.gmra.mxu0 %v505
        %v562 = vpop.f32.mrf.mxu0
        %v563 = vadd.f32 %v490, %v562
        %564 = vmatmul.f32.gmra.mxu0 %v508
        %v565 = vpop.f32.mrf.mxu0
        %v566 = vadd.f32 %v495, %v565
        %567 = vdwg.mxu0
        %568 = vmatpush.msra.mxu0 0.0
        %569 = vmatpush.msra.mxu0 0.0
        %570 = vmatpush.msra.mxu0 0.0
        %571 = vmatpush.msra.mxu0 0.0
        %572 = vmatpush.msra.mxu0 0.0
        %573 = vmatpush.msra.mxu0 0.0
        %574 = vmatpush.msra.mxu0 0.0
        %575 = vmatpush.msra.mxu0 0.0
        %576 = vmatpush.msra.mxu0 0.0
        %577 = vmatpush.msra.mxu0 0.0
        %578 = vmatpush.msra.mxu0 0.0
        %579 = vmatpush.msra.mxu0 0.0
        %580 = vmatpush.msra.mxu0 %v467
        %581 = vmatpush.msra.mxu0 %v463
        %582 = vmatpush.msra.mxu0 %v459
        %583 = vmatpush.msra.mxu0 %v455
        %584 = vmatmul.f32.gmra.mxu0 %v499
        %v585 = vpop.f32.mrf.mxu0
        %v586 = vadd.f32 %v480, %v585
        %587 = vmatmul.f32.gmra.mxu0 %v502
        %v588 = vpop.f32.mrf.mxu0
        %v589 = vadd.f32 %v485, %v588
        %590 = vmatmul.f32.gmra.mxu0 %v505
        %v591 = vpop.f32.mrf.mxu0
        %v592 = vadd.f32 %v490, %v591
        %593 = vmatmul.f32.gmra.mxu0 %v508
        %v594 = vpop.f32.mrf.mxu0
        %v595 = vadd.f32 %v495, %v594
        %596 = vdwg.mxu0
        %597 = vmatpush.msra.mxu0 0.0
        %598 = vmatpush.msra.mxu0 0.0
        %599 = vmatpush.msra.mxu0 0.0
        %600 = vmatpush.msra.mxu0 0.0
        %601 = vmatpush.msra.mxu0 0.0
        %602 = vmatpush.msra.mxu0 0.0
        %603 = vmatpush.msra.mxu0 0.0
        %604 = vmatpush.msra.mxu0 0.0
        %605 = vmatpush.msra.mxu0 0.0
        %606 = vmatpush.msra.mxu0 0.0
        %607 = vmatpush.msra.mxu0 0.0
        %608 = vmatpush.msra.mxu0 0.0
        %609 = vmatpush.msra.mxu0 %v468
        %610 = vmatpush.msra.mxu0 %v464
        %611 = vmatpush.msra.mxu0 %v460
        %612 = vmatpush.msra.mxu0 %v456
        %613 = vmatmul.f32.gmra.mxu0 %v499
        %v614 = vpop.f32.mrf.mxu0
        %v615 = vadd.f32 %v480, %v614
        %616 = vmatmul.f32.gmra.mxu0 %v502
        %v617 = vpop.f32.mrf.mxu0
        %v618 = vadd.f32 %v485, %v617
        %619 = vmatmul.f32.gmra.mxu0 %v505
        %v620 = vpop.f32.mrf.mxu0
        %v621 = vadd.f32 %v490, %v620
        %622 = vmatmul.f32.gmra.mxu0 %v508
        %v623 = vpop.f32.mrf.mxu0
        %v624 = vadd.f32 %v495, %v623
        %625 = vdwg.mxu0
        %v626 = vtanh.pop %v528
        %v627 = vtanh.pop %v557
        %v628 = vtanh.pop %v586
        %v629 = vtanh.pop %v615
        %v630 = vtanh.pop %v531
        %v631 = vtanh.pop %v560
        %v632 = vtanh.pop %v589
        %v633 = vtanh.pop %v618
        %v634 = vtanh.pop %v534
        %v635 = vtanh.pop %v563
        %v636 = vtanh.pop %v592
        %v637 = vtanh.pop %v621
        %v638 = vtanh.pop %v537
        %v639 = vtanh.pop %v566
        %v640 = vtanh.pop %v595
        %v641 = vtanh.pop %v624
        %v642 = vld [vmem:[%s5] sm:$0x7]
        %v643 = vld [vmem:[%s6] sm:$0x7]
        %645 = vset.pattern.permute.xlu0 0
        %646 = vperm.xlu0 %645, %v643
        %v647 = vpop.permute.xlu0 %646
        %v650 = vsel %vm497, %v642, 0
        %652 = vmatpush.msra.mxu0 0.0
        %653 = vmatpush.msra.mxu0 0.0
        %654 = vmatpush.msra.mxu0 0.0
        %655 = vmatpush.msra.mxu0 0.0
        %656 = vmatpush.msra.mxu0 0.0
        %657 = vmatpush.msra.mxu0 0.0
        %658 = vmatpush.msra.mxu0 0.0
        %659 = vmatpush.msra.mxu0 0.0
        %660 = vmatpush.msra.mxu0 0.0
        %661 = vmatpush.msra.mxu0 0.0
        %662 = vmatpush.msra.mxu0 0.0
        %663 = vmatpush.msra.mxu0 0.0
        %664 = vmatpush.msra.mxu0 %v638
        %665 = vmatpush.msra.mxu0 %v634
        %666 = vmatpush.msra.mxu0 %v630
        %667 = vmatpush.msra.mxu0 %v626
        %668 = vmatmul.f32.gmra.mxu0 %v650
        %v669 = vpop.f32.mrf.mxu0
        %v670 = vadd.f32 %v647, %v669
        %671 = vdwg.mxu0
        %672 = vmatpush.msra.mxu0 0.0
        %673 = vmatpush.msra.mxu0 0.0
        %674 = vmatpush.msra.mxu0 0.0
        %675 = vmatpush.msra.mxu0 0.0
        %676 = vmatpush.msra.mxu0 0.0
        %677 = vmatpush.msra.mxu0 0.0
        %678 = vmatpush.msra.mxu0 0.0
        %679 = vmatpush.msra.mxu0 0.0
        %680 = vmatpush.msra.mxu0 0.0
        %681 = vmatpush.msra.mxu0 0.0
        %682 = vmatpush.msra.mxu0 0.0
        %683 = vmatpush.msra.mxu0 0.0
        %684 = vmatpush.msra.mxu0 %v639
        %685 = vmatpush.msra.mxu0 %v635
        %686 = vmatpush.msra.mxu0 %v631
        %687 = vmatpush.msra.mxu0 %v627
        %688 = vmatmul.f32.gmra.mxu0 %v650
        %v689 = vpop.f32.mrf.mxu0
        %v690 = vadd.f32 %v647, %v689
        %691 = vdwg.mxu0
        %692 = vmatpush.msra.mxu0 0.0
        %693 = vmatpush.msra.mxu0 0.0
        %694 = vmatpush.msra.mxu0 0.0
        %695 = vmatpush.msra.mxu0 0.0
        %696 = vmatpush.msra.mxu0 0.0
        %697 = vmatpush.msra.mxu0 0.0
        %698 = vmatpush.msra.mxu0 0.0
        %699 = vmatpush.msra.mxu0 0.0
        %700 = vmatpush.msra.mxu0 0.0
        %701 = vmatpush.msra.mxu0 0.0
        %702 = vmatpush.msra.mxu0 0.0
        %703 = vmatpush.msra.mxu0 0.0
        %704 = vmatpush.msra.mxu0 %v640
        %705 = vmatpush.msra.mxu0 %v636
        %706 = vmatpush.msra.mxu0 %v632
        %707 = vmatpush.msra.mxu0 %v628
        %708 = vmatmul.f32.gmra.mxu0 %v650
        %v709 = vpop.f32.mrf.mxu0
        %v710 = vadd.f32 %v647, %v709
        %711 = vdwg.mxu0
        %712 = vmatpush.msra.mxu0 0.0
        %713 = vmatpush.msra.mxu0 0.0
        %714 = vmatpush.msra.mxu0 0.0
        %715 = vmatpush.msra.mxu0 0.0
        %716 = vmatpush.msra.mxu0 0.0
        %717 = vmatpush.msra.mxu0 0.0
        %718 = vmatpush.msra.mxu0 0.0
        %719 = vmatpush.msra.mxu0 0.0
        %720 = vmatpush.msra.mxu0 0.0
        %721 = vmatpush.msra.mxu0 0.0
        %722 = vmatpush.msra.mxu0 0.0
        %723 = vmatpush.msra.mxu0 0.0
        %724 = vmatpush.msra.mxu0 %v641
        %725 = vmatpush.msra.mxu0 %v637
        %726 = vmatpush.msra.mxu0 %v633
        %727 = vmatpush.msra.mxu0 %v629
        %728 = vmatmul.f32.gmra.mxu0 %v650
        %v729 = vpop.f32.mrf.mxu0
        %v730 = vadd.f32 %v647, %v729
        %731 = vdwg.mxu0
        %v736 = vrot.slane %v690, 4
        %v737 = vrot.slane %v730, 4
        %vm738 = vcmask 1043456
        %v739 = vsel %vm738, %v670, %v736
        %v740 = vsel %vm738, %v710, %v737
        %743 = vst [vmem:[%s272] sm:$0x77] %v739
        %744 = vst [vmem:[%s272 + $0x8] sm:$0x77] %v740
        %s745 = sand.u32 %s181, 1
        %s746 = scalar_lea.sflag [#allocation3], %s745
        %s747 = sand.u32 %s181, 1
        %s748 = smul.addr %s747, 16
        %s749 = scalar_lea.vmem [#allocation2], %s748
        // Predicated region
        $region49: #{tpu_custom_call.1} parent=47 // pred_check
          %p750 = pneg %p191
        $region50: #{tpu_custom_call.1} parent=47 // pred_check_branch
          %752 = sbr.rel (%p750) target = $region52
        $region51: #{tpu_custom_call.1} parent=47 // pred_region
          %s753 = smul.u32 4, %s21
          %755 = vsyncadd %s746, 0
          %s756 = smul.addr %s753, 4
          %s757 = scalar_lea.hbm %s7, %s756
          %s759 = sshll.u32 %s749, 4
          %s760 = int_to_ptr.vmem [resolvable:$true] %s759
          %s761 = sshll.u32 %s757, 4
          %s762 = int_to_ptr.hbm [resolvable:$true] %s761
          %764 = dma.vmem_to_hbm [thread:$0]  %s760, 256, %s762, %s746
        $region52: #{tpu_custom_call.1} parent=47 // pred_fallthru
          _
      $region48: #{tpu_custom_call.1} parent=5 // pred_fallthru
        _
      %p765 = scmp.le.s32.totalorder 2, %s16
      // Predicated region
      $region53: #{tpu_custom_call.1} parent=5 // pred_check
        %p766 = pneg %p765
      $region54: #{tpu_custom_call.1} parent=5 // pred_check_branch
        %768 = sbr.rel (%p766) target = $region56
      $region55: #{tpu_custom_call.1} parent=5 // pred_region
        %s769 = ssub.s32 %s16, 2
        // Predicated region
        $region57: #{tpu_custom_call.1} parent=55 // pred_check
          %p770 = pneg %p197
        $region58: #{tpu_custom_call.1} parent=55 // pred_check_branch
          %772 = sbr.rel (%p770) target = $region60
        $region59: #{tpu_custom_call.1} parent=55 // pred_region
          %s773 = sand.u32 %s182, 1
          %s774 = scalar_lea.sflag [#allocation3], %s773
          %s775 = sand.u32 %s182, 1
          %s776 = smul.addr %s775, 16
          %s777 = scalar_lea.vmem [#allocation2], %s776
          %779 = dma.done %s774, 256
        $region60: #{tpu_custom_call.1} parent=55 // pred_fallthru
          _
      $region56: #{tpu_custom_call.1} parent=5 // pred_fallthru
        _
    $region6: #{tpu_custom_call.1} parent=1 // loop_footer
      %s20 = sadd.s32 1, %s16
    $region7: #{tpu_custom_call.1} parent=1 // loop_footer_branch
      %15 = sbr.rel target = $region3
    $region8: #{tpu_custom_call.1} parent=1 // loop_exit
      _
    %780 = vsyncpa [#allocation3], 1
    %s781 = scalar_lea.sflag [#allocation3], 1
    %782 = vsyncpa %s781, 1

</llo_original>
